<compile_context>
chip_gen: v6e
topology: v6e:2x2x1
jax: 0.10.0
libtpu: 0.0.40
codegen_flags: <defaults>
</compile_context>

<pallas_src>
import functools

import numpy as np
import jax
import jax.numpy as jnp
from jax.experimental import pallas as pl
from jax.experimental.pallas import tpu as pltpu


def _round_up(x, m):
    return ((x + m - 1) // m) * m


def _gelu_exact(x):
    # PyTorch nn.GELU default = exact erf formulation (kept in f32).
    return 0.5 * x * (1.0 + jax.lax.erf(x * np.float32(1.0 / np.sqrt(2.0))))


# --------------------------------------------------------------------------
# Kernel
# --------------------------------------------------------------------------
def project_kernel(x_ref, w1_ref, w2_ref, p_ref, o_ref, h_acc, *, z_valid, eps):
    # x_ref : (TB, TK)   f32   (cast to bf16 in-kernel just before the MXU)
    # w1_ref: (TK, Zp)   bf16  (resident when the K grid has a single step)
    # w2_ref: (Zp, Zp)   bf16  (resident)
    # p_ref : (4, Zp)    f32   rows = [b1, b2, gamma, beta]
    # o_ref : (TB, Zp)   f32
    # h_acc : (TB, Zp)   f32 scratch, persists across the K grid axis
    k = pl.program_id(1)

    @pl.when(k == 0)
    def _():
        h_acc[...] = jnp.zeros_like(h_acc)

    # Linear(embedding_dim, z_dim): accumulate x @ w1 over the K grid axis.
    # bf16 operands on the MXU, f32 accumulation.
    h_acc[...] += jnp.dot(x_ref[...].astype(jnp.bfloat16), w1_ref[...],
                          preferred_element_type=jnp.float32)

    @pl.when(k == pl.num_programs(1) - 1)
    def _():
        p = p_ref[...]                       # (4, Zp) f32
        b1, b2, gamma, beta = p[0:1], p[1:2], p[2:3], p[3:4]

        h = h_acc[...] + b1                                            # f32

        # ResidualAdd( GELU -> Linear(z_dim, z_dim) -> Dropout(eval=identity) )
        r = jnp.dot(_gelu_exact(h).astype(jnp.bfloat16), w2_ref[...],
                    preferred_element_type=jnp.float32) + b2
        y = h + r                                                      # f32

        # LayerNorm(z_dim), eps = 1e-5 (PyTorch default).
        # Padded z lanes of y are exactly zero (zero-padded w1/w2/b1/b2 and
        # gelu(0)=0), so the mean numerator needs no mask; only the centered
        # values must be masked for the variance.
        zp = y.shape[-1]
        if z_valid != zp:
            denom = jnp.float32(z_valid)
            mean = jnp.sum(y, axis=-1, keepdims=True) / denom
            lane = jax.lax.broadcasted_iota(jnp.int32, y.shape, 1)
            cent = jnp.where(lane < z_valid, y - mean, 0.0)
            var = jnp.sum(cent * cent, axis=-1, keepdims=True) / denom
        else:
            mean = jnp.mean(y, axis=-1, keepdims=True)
            var = jnp.mean(jnp.square(y - mean), axis=-1, keepdims=True)

        y_n = (y - mean) * jax.lax.rsqrt(var + eps)
        o_ref[...] = (y_n * gamma + beta).astype(o_ref.dtype)


# --------------------------------------------------------------------------
# Tile planning
# --------------------------------------------------------------------------
def _plan_tiles(B, E, Z, *, vmem_budget_bytes=24 << 20, tk_cap=8192):
    """Pick TB / TK and padded extents against a VMEM working-set budget."""
    Z_pad = _round_up(Z, 128)
    E_pad = _round_up(E, 128)

    # Batch tile: multiple of 8 (f32 sublane). Aim for >= 2 tiles when B > 8
    # (so the "parallel" axis shards across both v7x TensorCores), cap at 256
    # (fills the v6e 256-row MXU).
    TB = min(256, max(8, _round_up(-(-B // 2), 8)))
    B_pad = _round_up(B, TB)

    # Fixed VMEM users (BlockSpec double-buffers every input/output block).
    fixed = (2 * Z_pad * Z_pad * 2       # w2 (bf16), resident
             + 2 * 8 * Z_pad * 4         # packed bias/scale block (sublane-padded)
             + 2 * TB * Z_pad * 4        # output tile (f32)
             + TB * Z_pad * 4)           # f32 accumulator scratch
    # Bytes per unit of TK: x tile (f32) + w1 tile (bf16), both double-buffered.
    per_tk = 2 * (TB * 4 + Z_pad * 2)
    tk_budget = max(128, ((vmem_budget_bytes - fixed) // per_tk) // 128 * 128)

    if E_pad <= tk_budget:
        TK = E_pad                       # whole w1 resident; K grid collapses to 1
    else:
        target = min(tk_budget, tk_cap)
        TK = 128
        for cand in range(target, 127, -128):   # 128-multiple divisor of E_pad
            if E_pad % cand == 0:
                TK = cand
                break

    grid = (B_pad // TB, E_pad // TK)
    est_vmem = fixed + per_tk * TK
    return TB, B_pad, TK, E_pad, Z_pad, grid, est_vmem


# --------------------------------------------------------------------------
# Parameters
# --------------------------------------------------------------------------
def init_params(key, embedding_dim, z_dim):
    """Raw (unpadded) parameters, PyTorch-style uniform fan-in init."""
    k1, k2, k3, k4 = jax.random.split(key, 4)
    lim1 = 1.0 / np.sqrt(embedding_dim)
    lim2 = 1.0 / np.sqrt(z_dim)
    return {
        "w1": jax.random.uniform(k1, (embedding_dim, z_dim), jnp.float32, -lim1, lim1),
        "b1": jax.random.uniform(k2, (1, z_dim), jnp.float32, -lim1, lim1),
        "w2": jax.random.uniform(k3, (z_dim, z_dim), jnp.float32, -lim2, lim2),
        "b2": jax.random.uniform(k4, (1, z_dim), jnp.float32, -lim2, lim2),
        "gamma": jnp.ones((1, z_dim), jnp.float32),
        "beta": jnp.zeros((1, z_dim), jnp.float32),
        # unused in forward, kept for parity with the module:
        "logit_scale": jnp.array(np.log(1.0 / 0.07), jnp.float32),
    }


def prepare_params(params):
    """One-time pad + cast of the weights (call once, reuse every forward)."""
    E, Z = params["w1"].shape
    E_pad = _round_up(E, 128)
    Z_pad = _round_up(Z, 128)
    w1 = jnp.pad(params["w1"], ((0, E_pad - E), (0, Z_pad - Z))).astype(jnp.bfloat16)
    w2 = jnp.pad(params["w2"], ((0, Z_pad - Z), (0, Z_pad - Z))).astype(jnp.bfloat16)
    packed = jnp.concatenate(
        [params["b1"], params["b2"], params["gamma"], params["beta"]], axis=0)
    packed = jnp.pad(packed, ((0, 0), (0, Z_pad - Z))).astype(jnp.float32)
    prepared = {
        "w1": jax.device_put(w1),
        "w2": jax.device_put(w2),
        "packed": jax.device_put(packed),
        "embedding_dim": E,
        "z_dim": Z,
    }
    return prepared


# --------------------------------------------------------------------------
# Forward
# --------------------------------------------------------------------------
def base_model_forward(x, prepared, *, vmem_budget_bytes=24 << 20):
    """x: (B, c_num, timesteps) float32.  Returns (B, z_dim) float32."""
    B = x.shape[0]
    x_flat = x.reshape(B, -1)            # unsqueeze(1) + identity backbone + FlattenHead
    E = x_flat.shape[1]
    Z = prepared["z_dim"]
    if E != prepared["embedding_dim"]:
        raise ValueError("flattened input size does not match embedding_dim")

    TB, B_pad, TK, E_pad, Z_pad, grid, est_vmem = _plan_tiles(
        B, E, Z, vmem_budget_bytes=vmem_budget_bytes)

    # Pad the activation only if needed; keep it f32 (cast to bf16 in-kernel).
    if (B_pad, E_pad) != (B, E):
        x_flat = jnp.pad(x_flat, ((0, B_pad - B), (0, E_pad - E)))

    # Advisory cost estimate for the XLA scheduler.
    w1_bytes = E_pad * Z_pad * 2 * (1 if grid[1] == 1 else grid[0])
    cost = pl.CostEstimate(
        flops=2 * B_pad * E_pad * Z_pad + 2 * B_pad * Z_pad * Z_pad + 12 * B_pad * Z_pad,
        transcendentals=2 * B_pad * Z_pad,           # erf + rsqrt
        bytes_accessed=(B_pad * E_pad * 4 + w1_bytes
                        + Z_pad * Z_pad * 2 + B_pad * Z_pad * 4),
    )

    compiler_kwargs = dict(dimension_semantics=("parallel", "arbitrary"))
    if est_vmem > (12 << 20):
        # Exceeds the smallest default scoped budget (16 MiB on v5e); request
        # headroom but stay well under v7x's 64 MiB physical VMEM.
        compiler_kwargs["vmem_limit_bytes"] = int(
            min(_round_up(int(est_vmem * 1.5), 1 << 20), 48 << 20))

    kernel = functools.partial(project_kernel, z_valid=Z, eps=1e-5)

    out = pl.pallas_call(
        kernel,
        out_shape=jax.ShapeDtypeStruct((B_pad, Z_pad), jnp.float32),
        grid_spec=pltpu.PrefetchScalarGridSpec(
            num_scalar_prefetch=0,
            grid=grid,
            in_specs=[
                pl.BlockSpec((TB, TK), lambda i, k: (i, k)),         # x (f32, streamed)
                pl.BlockSpec((TK, Z_pad), lambda i, k: (k, 0)),      # w1 (resident if grid K==1)
                pl.BlockSpec((Z_pad, Z_pad), lambda i, k: (0, 0)),   # w2 (resident)
                pl.BlockSpec((4, Z_pad), lambda i, k: (0, 0)),       # packed b1/b2/gamma/beta
            ],
            out_specs=pl.BlockSpec((TB, Z_pad), lambda i, k: (i, 0)),
            scratch_shapes=[pltpu.VMEM((TB, Z_pad), jnp.float32)],
        ),
        compiler_params=pltpu.CompilerParams(**compiler_kwargs),
        cost_estimate=cost,
    )(x_flat, prepared["w1"], prepared["w2"], prepared["packed"])

    return out[:B, :Z]


# --------------------------------------------------------------------------
# Example / self-check
# --------------------------------------------------------------------------
if __name__ == "__main__":
    # Small shapes consistent with the module: flatten(c_num * timesteps) == embedding_dim.
    B, C_NUM, T = 2, 4, 64
    EMBEDDING_DIM = C_NUM * T          # 256
    Z_DIM = 128

    key = jax.random.PRNGKey(0)
    kx, kp = jax.random.split(key)
    x = jax.random.normal(kx, (B, C_NUM, T), jnp.float32)

    params = init_params(kp, EMBEDDING_DIM, Z_DIM)
    prepared = prepare_params(params)        # one-time pad + cast (not in hot path)

    out = base_model_forward(x, prepared)
    out = jax.block_until_ready(out)
    assert out.shape == (B, Z_DIM)

    # Reference in plain JAX using the same bf16-rounded matmul operands
    # (apples-to-apples with the MXU's bf16-operand / f32-accumulate path).
    rb = lambda a: a.astype(jnp.bfloat16).astype(jnp.float32)
    xf = x.reshape(B, -1)
    h = jnp.dot(rb(xf), rb(params["w1"]),
                precision=jax.lax.Precision.HIGHEST) + params["b1"]
    g = 0.5 * h * (1.0 + jax.lax.erf(h * np.float32(1.0 / np.sqrt(2.0))))
    r = jnp.dot(rb(g), rb(params["w2"]),
                precision=jax.lax.Precision.HIGHEST) + params["b2"]
    y = h + r
    mu = y.mean(-1, keepdims=True)
    var = ((y - mu) ** 2).mean(-1, keepdims=True)
    ref = (y - mu) / jnp.sqrt(var + 1e-5) * params["gamma"] + params["beta"]

    np.testing.assert_allclose(np.asarray(out), np.asarray(ref), rtol=1e-2, atol=1e-2)
    print("KERNEL_OK")
</pallas_src>

<mosaic_0001>
module attributes {stable_mosaic.version = 11 : i64} {
  func.func @project_kernel(%arg0: i32, %arg1: i32, %arg2: memref<8x256xf32, #tpu.memory_space<vmem>>, %arg3: memref<256x128xbf16, #tpu.memory_space<vmem>>, %arg4: memref<128x128xbf16, #tpu.memory_space<vmem>>, %arg5: memref<4x128xf32, #tpu.memory_space<vmem>>, %arg6: memref<8x128xf32, #tpu.memory_space<vmem>>, %arg7: memref<8x128xf32, #tpu.memory_space<vmem>>) attributes {dimension_semantics = [#tpu.dimension_semantics<parallel>, #tpu.dimension_semantics<arbitrary>], iteration_bounds = array<i64: 1, 1>, scalar_prefetch = 0 : i64, scratch_operands = 1 : i64, tpu.core_type = #tpu.core_type<tc>, window_params = [{transform_indices = @transform_0, window_bounds = array<i64: 8, 256>}, {transform_indices = @transform_1, window_bounds = array<i64: 256, 128>}, {pipeline_mode = #tpu.pipeline_mode<synchronous>, transform_indices = @transform_2, window_bounds = array<i64: 128, 128>}, {pipeline_mode = #tpu.pipeline_mode<synchronous>, transform_indices = @transform_3, window_bounds = array<i64: 4, 128>}, {transform_indices = @transform_4, window_bounds = array<i64: 8, 128>}]} {
    %c0_i32 = arith.constant 0 : i32
    %0 = arith.cmpi eq, %arg1, %c0_i32 : i32
    %1 = arith.extui %0 : i1 to i32
    %c0_i32_0 = arith.constant 0 : i32
    %2 = arith.cmpi ne, %1, %c0_i32_0 : i32
    scf.if %2 {
      %cst_10 = arith.constant 0.000000e+00 : f32
      %13 = vector.broadcast %cst_10 : f32 to vector<8x128xf32>
      %c0_11 = arith.constant 0 : index
      %c0_12 = arith.constant 0 : index
      %14 = vector.load %arg7[%c0_11, %c0_12] : memref<8x128xf32, #tpu.memory_space<vmem>>, vector<8x128xf32>
      tpu.vector_store %arg7[%c0_11, %c0_12], %13 {strides = array<i32>} : memref<8x128xf32, #tpu.memory_space<vmem>>, vector<8x128xf32>,
    } else {
    }
    %c0 = arith.constant 0 : index
    %c0_1 = arith.constant 0 : index
    %3 = vector.load %arg7[%c0, %c0_1] : memref<8x128xf32, #tpu.memory_space<vmem>>, vector<8x128xf32>
    %c0_2 = arith.constant 0 : index
    %c0_3 = arith.constant 0 : index
    %4 = vector.load %arg2[%c0_2, %c0_3] : memref<8x256xf32, #tpu.memory_space<vmem>>, vector<8x256xf32>
    %5 = arith.truncf %4 : vector<8x256xf32> to vector<8x256xbf16>
    %c0_4 = arith.constant 0 : index
    %c0_5 = arith.constant 0 : index
    %6 = vector.load %arg3[%c0_4, %c0_5] : memref<256x128xbf16, #tpu.memory_space<vmem>>, vector<256x128xbf16>
    %cst = arith.constant dense<0.000000e+00> : vector<8x128xf32>
    %7 = tpu.matmul %5, %6, %cst {dimension_numbers = #tpu.dot_dimension_numbers<[1], [0], [0], [1], [0, 0, 1, 1], [], []>} : vector<8x256xbf16>, vector<256x128xbf16>, vector<8x128xf32> -> vector<8x128xf32>
    %8 = arith.addf %3, %7 : vector<8x128xf32>
    %c0_6 = arith.constant 0 : index
    %c0_7 = arith.constant 0 : index
    %9 = vector.load %arg7[%c0_6, %c0_7] : memref<8x128xf32, #tpu.memory_space<vmem>>, vector<8x128xf32>
    tpu.vector_store %arg7[%c0_6, %c0_7], %8 {strides = array<i32>} : memref<8x128xf32, #tpu.memory_space<vmem>>, vector<8x128xf32>,
    %c0_i32_8 = arith.constant 0 : i32
    %10 = arith.cmpi eq, %arg1, %c0_i32_8 : i32
    %11 = arith.extui %10 : i1 to i32
    %c0_i32_9 = arith.constant 0 : i32
    %12 = arith.cmpi ne, %11, %c0_i32_9 : i32
    scf.if %12 {
      %c0_10 = arith.constant 0 : index
      %c0_11 = arith.constant 0 : index
      %13 = vector.load %arg5[%c0_10, %c0_11] : memref<4x128xf32, #tpu.memory_space<vmem>>, vector<4x128xf32>
      %14 = vector.extract_strided_slice %13 {offsets = [0, 0], sizes = [1, 128], strides = [1, 1]} : vector<4x128xf32> to vector<1x128xf32>
      %15 = vector.extract_strided_slice %13 {offsets = [1, 0], sizes = [1, 128], strides = [1, 1]} : vector<4x128xf32> to vector<1x128xf32>
      %16 = vector.extract_strided_slice %13 {offsets = [2, 0], sizes = [1, 128], strides = [1, 1]} : vector<4x128xf32> to vector<1x128xf32>
      %17 = vector.extract_strided_slice %13 {offsets = [3, 0], sizes = [1, 128], strides = [1, 1]} : vector<4x128xf32> to vector<1x128xf32>
      %c0_12 = arith.constant 0 : index
      %c0_13 = arith.constant 0 : index
      %18 = vector.load %arg7[%c0_12, %c0_13] : memref<8x128xf32, #tpu.memory_space<vmem>>, vector<8x128xf32>
      %19 = vector.broadcast %14 : vector<1x128xf32> to vector<8x128xf32>
      %20 = arith.addf %18, %19 : vector<8x128xf32>
      %cst_14 = arith.constant 5.000000e-01 : f32
      %21 = vector.broadcast %cst_14 : f32 to vector<8x128xf32>
      %22 = arith.mulf %21, %20 : vector<8x128xf32>
      %cst_15 = arith.constant 0.707106769 : f32
      %23 = vector.broadcast %cst_15 : f32 to vector<8x128xf32>
      %24 = arith.mulf %20, %23 : vector<8x128xf32>
      %25 = math.erf %24 : vector<8x128xf32>
      %cst_16 = arith.constant 1.000000e+00 : f32
      %26 = vector.broadcast %cst_16 : f32 to vector<8x128xf32>
      %27 = arith.addf %26, %25 : vector<8x128xf32>
      %28 = arith.mulf %22, %27 : vector<8x128xf32>
      %29 = arith.truncf %28 : vector<8x128xf32> to vector<8x128xbf16>
      %c0_17 = arith.constant 0 : index
      %c0_18 = arith.constant 0 : index
      %30 = vector.load %arg4[%c0_17, %c0_18] : memref<128x128xbf16, #tpu.memory_space<vmem>>, vector<128x128xbf16>
      %cst_19 = arith.constant dense<0.000000e+00> : vector<8x128xf32>
      %31 = tpu.matmul %29, %30, %cst_19 {dimension_numbers = #tpu.dot_dimension_numbers<[1], [0], [0], [1], [0, 0, 1, 1], [], []>} : vector<8x128xbf16>, vector<128x128xbf16>, vector<8x128xf32> -> vector<8x128xf32>
      %32 = vector.broadcast %15 : vector<1x128xf32> to vector<8x128xf32>
      %33 = arith.addf %31, %32 : vector<8x128xf32>
      %34 = arith.addf %20, %33 : vector<8x128xf32>
      %cst_20 = arith.constant dense<0.000000e+00> : vector<8xf32>
      %35 = vector.multi_reduction <add>, %34, %cst_20 [1] : vector<8x128xf32> to vector<8xf32>
      %36 = vector.shape_cast %35 : vector<8xf32> to vector<8x1xf32>
      %cst_21 = arith.constant 1.280000e+02 : f32
      %37 = vector.broadcast %cst_21 : f32 to vector<8x1xf32>
      %38 = arith.divf %36, %37 : vector<8x1xf32>
      %39 = vector.broadcast %38 : vector<8x1xf32> to vector<8x128xf32>
      %40 = arith.subf %34, %39 : vector<8x128xf32>
      %41 = arith.mulf %40, %40 : vector<8x128xf32>
      %cst_22 = arith.constant dense<0.000000e+00> : vector<8xf32>
      %42 = vector.multi_reduction <add>, %41, %cst_22 [1] : vector<8x128xf32> to vector<8xf32>
      %43 = vector.shape_cast %42 : vector<8xf32> to vector<8x1xf32>
      %cst_23 = arith.constant 1.280000e+02 : f32
      %44 = vector.broadcast %cst_23 : f32 to vector<8x1xf32>
      %45 = arith.divf %43, %44 : vector<8x1xf32>
      %46 = vector.broadcast %38 : vector<8x1xf32> to vector<8x128xf32>
      %47 = arith.subf %34, %46 : vector<8x128xf32>
      %cst_24 = arith.constant 9.99999974E-6 : f32
      %48 = vector.broadcast %cst_24 : f32 to vector<8x1xf32>
      %49 = arith.addf %45, %48 : vector<8x1xf32>
      %50 = math.rsqrt %49 : vector<8x1xf32>
      %51 = vector.broadcast %50 : vector<8x1xf32> to vector<8x128xf32>
      %52 = arith.mulf %47, %51 : vector<8x128xf32>
      %53 = vector.broadcast %16 : vector<1x128xf32> to vector<8x128xf32>
      %54 = arith.mulf %52, %53 : vector<8x128xf32>
      %55 = vector.broadcast %17 : vector<1x128xf32> to vector<8x128xf32>
      %56 = arith.addf %54, %55 : vector<8x128xf32>
      %c0_25 = arith.constant 0 : index
      %c0_26 = arith.constant 0 : index
      %57 = vector.load %arg6[%c0_25, %c0_26] : memref<8x128xf32, #tpu.memory_space<vmem>>, vector<8x128xf32>
      tpu.vector_store %arg6[%c0_25, %c0_26], %56 {strides = array<i32>} : memref<8x128xf32, #tpu.memory_space<vmem>>, vector<8x128xf32>,
    } else {
    }
    return
  }
  func.func @transform_0(%arg0: i32, %arg1: i32) -> (i32, i32) {
    %c0_i32 = arith.constant 0 : i32
    return %arg0, %arg1 : i32, i32
  }
  func.func @transform_1(%arg0: i32, %arg1: i32) -> (i32, i32) {
    %c0_i32 = arith.constant 0 : i32
    %c0_i32_0 = arith.constant 0 : i32
    return %arg1, %c0_i32 : i32, i32
  }
  func.func @transform_2(%arg0: i32, %arg1: i32) -> (i32, i32) {
    %c0_i32 = arith.constant 0 : i32
    %c0_i32_0 = arith.constant 0 : i32
    %c0_i32_1 = arith.constant 0 : i32
    return %c0_i32, %c0_i32_0 : i32, i32
  }
  func.func @transform_3(%arg0: i32, %arg1: i32) -> (i32, i32) {
    %c0_i32 = arith.constant 0 : i32
    %c0_i32_0 = arith.constant 0 : i32
    %c0_i32_1 = arith.constant 0 : i32
    return %c0_i32, %c0_i32_0 : i32, i32
  }
  func.func @transform_4(%arg0: i32, %arg1: i32) -> (i32, i32) {
    %c0_i32 = arith.constant 0 : i32
    %c0_i32_0 = arith.constant 0 : i32
    return %arg0, %c0_i32 : i32, i32
  }
}

</mosaic_0001>

<llo_original>
// kernel: tpu_custom_call.1
$region0: #{tpu_custom_call.1}
  #allocation0 [shape = 'u32[]', space=smem, size = 0x4, offset = 0x4, fixed_abs, tag = 'smem constant byte address 0x4 - core index']
  #allocation1 [shape = 'u32[144,128]{1,0:T(1,128)}', space=vmem, size = 0x12000, scoped, tag = 'internal scratch']
  #allocation2 [shape = 'f32[8,128]{1,0:T(8,128)}', space=vmem, size = 0x1000, scoped, tag = 'scratch operand']
  %s0 = inlined_call_operand.hbm [shape: f32[8,256], index: 0, kind: input, shape index: {}]
  %s1 = inlined_call_operand.hbm [shape: bf16[256,128], index: 1, kind: input, shape index: {}]
  %s2 = inlined_call_operand.hbm [shape: bf16[128,128], index: 2, kind: input, shape index: {}]
  %s3 = inlined_call_operand.vmem [shape: f32[4,128], index: 3, kind: input, shape index: {}]
  %s4 = inlined_call_operand.hbm [shape: f32[8,128], index: 4, kind: output, shape index: {}]
  %s5 = sld [smem:[#allocation0]]
  $region46: #{tpu_custom_call.1} parent=0
    _
  %s7 = ssub.s32 1, %s5
  %s8 = scalar_select 0, %s7, %s5
  $region1: #{tpu_custom_call.1} parent=0
    #allocation3 [shape = 'u8[8192]{0}', space=vmem, size = 0x2000, scoped, tag = 'input window, operand 0, single buffered']
    #allocation4 [shape = 's32[1]{0}', space=sflag, size = 0x4, scoped, tag = 'scoped memory for tpu_custom_call.1']
    #allocation5 [shape = 's32[1]{0}', space=sflag, size = 0x4, scoped, tag = 'scoped memory for tpu_custom_call.1']
    #allocation6 [shape = 'u8[65536]{0}', space=vmem, size = 0x10000, scoped, tag = 'input window, operand 1, single buffered']
    #allocation7 [shape = 's32[1]{0}', space=sflag, size = 0x4, scoped, tag = 'scoped memory for tpu_custom_call.1']
    #allocation8 [shape = 'u8[32768]{0}', space=vmem, size = 0x8000, scoped, tag = 'input window, operand 2, single buffered']
    #allocation9 [shape = 'u8[4096]{0}', space=vmem, size = 0x1000, scoped, tag = 'output window, operand 0, single buffered']
    %9 = vsyncpa [#allocation4], 0
    %10 = vsyncpa [#allocation7], 0
    %11 = vsyncpa [#allocation5], 0
    // Predicated region
    $region2: #{tpu_custom_call.1} parent=1 // pred_check
      _
    $region3: #{tpu_custom_call.1} parent=1 // pred_check_branch
      %13 = sbr.rel (0) target = $region5
    $region4: #{tpu_custom_call.1} parent=1 // pred_region
      %s15 = ssub.s32 256, 256
      %16 = vsyncadd [#allocation4], %s15
      %s18 = sshll.u32 [#allocation3], 4
      %s19 = int_to_ptr.vmem [resolvable:$true] %s18
      %21 = dma.hbm_to_vmem [thread:$0]  %s0, 256, %s19, [#allocation4]
    $region5: #{tpu_custom_call.1} parent=1 // pred_fallthru
      _
    // Predicated region
    $region6: #{tpu_custom_call.1} parent=1 // pred_check
      _
    $region7: #{tpu_custom_call.1} parent=1 // pred_check_branch
      %23 = sbr.rel (0) target = $region9
    $region8: #{tpu_custom_call.1} parent=1 // pred_region
      %s25 = ssub.s32 2048, 2048
      %26 = vsyncadd [#allocation7], %s25
      %s27 = sshll.u32 [#allocation6], 4
      %s28 = int_to_ptr.vmem [resolvable:$true] %s27
      %33 = dma.hbm_to_vmem [thread:$0]  %s1, 2048, %s28, [#allocation7], 64, 64, 4
    $region9: #{tpu_custom_call.1} parent=1 // pred_fallthru
      _
    // Predicated region
    $region10: #{tpu_custom_call.1} parent=1 // pred_check
      _
    $region11: #{tpu_custom_call.1} parent=1 // pred_check_branch
      %35 = sbr.rel (0) target = $region13
    $region12: #{tpu_custom_call.1} parent=1 // pred_region
      %s37 = ssub.s32 1024, 1024
      %38 = vsyncadd [#allocation7], %s37
      %s39 = sshll.u32 [#allocation8], 4
      %s40 = int_to_ptr.vmem [resolvable:$true] %s39
      %45 = dma.hbm_to_vmem [thread:$0]  %s2, 1024, %s40, [#allocation7], 64, 64, 4
    $region13: #{tpu_custom_call.1} parent=1 // pred_fallthru
      _
    // Predicated region
    $region14: #{tpu_custom_call.1} parent=1 // pred_check
      _
    $region15: #{tpu_custom_call.1} parent=1 // pred_check_branch
      %47 = sbr.rel (0) target = $region17
    $region16: #{tpu_custom_call.1} parent=1 // pred_region
      _
    $region17: #{tpu_custom_call.1} parent=1 // pred_fallthru
      _
    // Predicated region
    $region18: #{tpu_custom_call.1} parent=1 // pred_check
      _
    $region19: #{tpu_custom_call.1} parent=1 // pred_check_branch
      %49 = sbr.rel (0) target = $region21
    $region20: #{tpu_custom_call.1} parent=1 // pred_region
      %50 = dma.done [#allocation4], 256
    $region21: #{tpu_custom_call.1} parent=1 // pred_fallthru
      _
    // Predicated region
    $region22: #{tpu_custom_call.1} parent=1 // pred_check
      _
    $region23: #{tpu_custom_call.1} parent=1 // pred_check_branch
      %52 = sbr.rel (0) target = $region25
    $region24: #{tpu_custom_call.1} parent=1 // pred_region
      %53 = dma.done [#allocation7], 2048
    $region25: #{tpu_custom_call.1} parent=1 // pred_fallthru
      _
    // Predicated region
    $region26: #{tpu_custom_call.1} parent=1 // pred_check
      _
    $region27: #{tpu_custom_call.1} parent=1 // pred_check_branch
      %55 = sbr.rel (0) target = $region29
    $region28: #{tpu_custom_call.1} parent=1 // pred_region
      %56 = dma.done [#allocation7], 1024
    $region29: #{tpu_custom_call.1} parent=1 // pred_fallthru
      _
    %p58 = scmp.eq.s32.totalorder 0, 0
    // Predicated region
    $region30: #{tpu_custom_call.1} parent=1 // pred_check
      %p59 = pneg %p58
    $region31: #{tpu_custom_call.1} parent=1 // pred_check_branch
      %61 = sbr.rel (%p59) target = $region33
    $region32: #{tpu_custom_call.1} parent=1 // pred_region
      %62 = vst [vmem:[#allocation2] sm:$0xff] 0.0
    $region33: #{tpu_custom_call.1} parent=1 // pred_fallthru
      _
    %v63 = vld [vmem:[#allocation2] sm:$0xff]
    %v64 = vld [vmem:[#allocation3] sm:$0xff]
    %v65 = vld [vmem:[#allocation3 + $0x8] sm:$0xff]
    %v66 = vpack.c.bf16 %v64, %v64
    %v67 = vpack.c.bf16 %v65, %v65
    %v68 = vld [vmem:[#allocation6] sm:$0xf]
    %v69 = vld [vmem:[#allocation6 + $0x4] sm:$0xf]
    %v70 = vld [vmem:[#allocation6 + $0x8] sm:$0xf]
    %v71 = vld [vmem:[#allocation6 + $0xc] sm:$0xf]
    %v72 = vld [vmem:[#allocation6 + $0x10] sm:$0xf]
    %v73 = vld [vmem:[#allocation6 + $0x14] sm:$0xf]
    %v74 = vld [vmem:[#allocation6 + $0x18] sm:$0xf]
    %v75 = vld [vmem:[#allocation6 + $0x1c] sm:$0xf]
    %v76 = vld [vmem:[#allocation6 + $0x20] sm:$0xf]
    %v77 = vld [vmem:[#allocation6 + $0x24] sm:$0xf]
    %v78 = vld [vmem:[#allocation6 + $0x28] sm:$0xf]
    %v79 = vld [vmem:[#allocation6 + $0x2c] sm:$0xf]
    %v80 = vld [vmem:[#allocation6 + $0x30] sm:$0xf]
    %v81 = vld [vmem:[#allocation6 + $0x34] sm:$0xf]
    %v82 = vld [vmem:[#allocation6 + $0x38] sm:$0xf]
    %v83 = vld [vmem:[#allocation6 + $0x3c] sm:$0xf]
    %v84 = vld [vmem:[#allocation6 + $0x40] sm:$0xf]
    %v85 = vld [vmem:[#allocation6 + $0x44] sm:$0xf]
    %v86 = vld [vmem:[#allocation6 + $0x48] sm:$0xf]
    %v87 = vld [vmem:[#allocation6 + $0x4c] sm:$0xf]
    %v88 = vld [vmem:[#allocation6 + $0x50] sm:$0xf]
    %v89 = vld [vmem:[#allocation6 + $0x54] sm:$0xf]
    %v90 = vld [vmem:[#allocation6 + $0x58] sm:$0xf]
    %v91 = vld [vmem:[#allocation6 + $0x5c] sm:$0xf]
    %v92 = vld [vmem:[#allocation6 + $0x60] sm:$0xf]
    %v93 = vld [vmem:[#allocation6 + $0x64] sm:$0xf]
    %v94 = vld [vmem:[#allocation6 + $0x68] sm:$0xf]
    %v95 = vld [vmem:[#allocation6 + $0x6c] sm:$0xf]
    %v96 = vld [vmem:[#allocation6 + $0x70] sm:$0xf]
    %v97 = vld [vmem:[#allocation6 + $0x74] sm:$0xf]
    %v98 = vld [vmem:[#allocation6 + $0x78] sm:$0xf]
    %v99 = vld [vmem:[#allocation6 + $0x7c] sm:$0xf]
    %v132 = vunpack.c.l.b16 %v68
    %v133 = vunpack.c.l.b16 %v69
    %v134 = vunpack.c.l.b16 %v70
    %v135 = vunpack.c.l.b16 %v71
    %v136 = vunpack.c.l.b16 %v72
    %v137 = vunpack.c.l.b16 %v73
    %v138 = vunpack.c.l.b16 %v74
    %v139 = vunpack.c.l.b16 %v75
    %v140 = vunpack.c.l.b16 %v76
    %v141 = vunpack.c.l.b16 %v77
    %v142 = vunpack.c.l.b16 %v78
    %v143 = vunpack.c.l.b16 %v79
    %v144 = vunpack.c.l.b16 %v80
    %v145 = vunpack.c.l.b16 %v81
    %v146 = vunpack.c.l.b16 %v82
    %v147 = vunpack.c.l.b16 %v83
    %v148 = vunpack.c.l.b16 %v84
    %v149 = vunpack.c.l.b16 %v85
    %v150 = vunpack.c.l.b16 %v86
    %v151 = vunpack.c.l.b16 %v87
    %v152 = vunpack.c.l.b16 %v88
    %v153 = vunpack.c.l.b16 %v89
    %v154 = vunpack.c.l.b16 %v90
    %v155 = vunpack.c.l.b16 %v91
    %v156 = vunpack.c.l.b16 %v92
    %v157 = vunpack.c.l.b16 %v93
    %v158 = vunpack.c.l.b16 %v94
    %v159 = vunpack.c.l.b16 %v95
    %v160 = vunpack.c.l.b16 %v96
    %v161 = vunpack.c.l.b16 %v97
    %v162 = vunpack.c.l.b16 %v98
    %v163 = vunpack.c.l.b16 %v99
    %v164 = vpack.c.b16 %v133, %v132
    %v165 = vpack.c.b16 %v135, %v134
    %v166 = vpack.c.b16 %v137, %v136
    %v167 = vpack.c.b16 %v139, %v138
    %v168 = vpack.c.b16 %v141, %v140
    %v169 = vpack.c.b16 %v143, %v142
    %v170 = vpack.c.b16 %v145, %v144
    %v171 = vpack.c.b16 %v147, %v146
    %v172 = vpack.c.b16 %v149, %v148
    %v173 = vpack.c.b16 %v151, %v150
    %v174 = vpack.c.b16 %v153, %v152
    %v175 = vpack.c.b16 %v155, %v154
    %v176 = vpack.c.b16 %v157, %v156
    %v177 = vpack.c.b16 %v159, %v158
    %v178 = vpack.c.b16 %v161, %v160
    %v179 = vpack.c.b16 %v163, %v162
    %196 = vmatprep.subr.bf16.mxu0 0
    %197 = vmatpush1.bf16.msra.mxu0 %v171
    %198 = vmatprep.subr.bf16.mxu0 0
    %199 = vmatpush1.bf16.msra.mxu0 %v170
    %200 = vmatprep.subr.bf16.mxu0 0
    %201 = vmatpush1.bf16.msra.mxu0 %v169
    %202 = vmatprep.subr.bf16.mxu0 0
    %203 = vmatpush1.bf16.msra.mxu0 %v168
    %204 = vmatprep.subr.bf16.mxu0 0
    %205 = vmatpush1.bf16.msra.mxu0 %v167
    %206 = vmatprep.subr.bf16.mxu0 0
    %207 = vmatpush1.bf16.msra.mxu0 %v166
    %208 = vmatprep.subr.bf16.mxu0 0
    %209 = vmatpush1.bf16.msra.mxu0 %v165
    %210 = vmatprep.subr.bf16.mxu0 0
    %211 = vmatpush1.bf16.msra.mxu0 %v164
    %212 = vmatprep.subr.bf16.mxu0 0
    %213 = vmatpush2.bf16.msra.mxu0 %v179
    %214 = vmatprep.subr.bf16.mxu0 0
    %215 = vmatpush2.bf16.msra.mxu0 %v178
    %216 = vmatprep.subr.bf16.mxu0 0
    %217 = vmatpush2.bf16.msra.mxu0 %v177
    %218 = vmatprep.subr.bf16.mxu0 0
    %219 = vmatpush2.bf16.msra.mxu0 %v176
    %220 = vmatprep.subr.bf16.mxu0 0
    %221 = vmatpush2.bf16.msra.mxu0 %v175
    %222 = vmatprep.subr.bf16.mxu0 0
    %223 = vmatpush2.bf16.msra.mxu0 %v174
    %224 = vmatprep.subr.bf16.mxu0 0
    %225 = vmatpush2.bf16.msra.mxu0 %v173
    %226 = vmatprep.subr.bf16.mxu0 0
    %227 = vmatpush2.bf16.msra.mxu0 %v172
    %228 = vmatprep.mubr.bf16.mxu0 %v67
    %229 = vmatmul.mubr.bf16.gmra.mxu0 %v66
    %v230 = vpop.f32.mrf.mxu0
    %v231 = vadd.f32 0.0, %v230
    %v232 = vpop.f32.mrf.mxu0
    %v233 = vpop.f32.mrf.mxu0
    %v234 = vpop.f32.mrf.mxu0
    %235 = vdwg.mxu0
    %v236 = vadd.f32 %v63, %v231
    %237 = vst [vmem:[#allocation2] sm:$0xff] %v236
    // Predicated region
    $region34: #{tpu_custom_call.1} parent=1 // pred_check
      %p238 = pneg %p58
    $region35: #{tpu_custom_call.1} parent=1 // pred_check_branch
      %240 = sbr.rel (%p238) target = $region37
    $region36: #{tpu_custom_call.1} parent=1 // pred_region
      %v241 = vld [vmem:[%s3] sm:$0xf]
      %v242 = vld [vmem:[#allocation2] sm:$0xff]
      %v243 = vlaneseq
      %v244 = vshrl.u32 %v243, 7
      %v245 = vsub.s32 0, %v244
      %v246 = vrot.slane %v241, %v245
      %v247 = vadd.f32 %v242, %v246
      %v248 = vmul.f32 %v247, 0.5
      %v249 = vmul.f32 %v247, 0.70710677
      %v250 = verf.f32.pop %v249
      %v251 = vadd.f32 %v250, 1.0
      %v252 = vmul.f32 %v248, %v251
      %v253 = vpack.c.bf16 %v252, %v252
      %v254 = vld [vmem:[#allocation8] sm:$0xf]
      %v255 = vld [vmem:[#allocation8 + $0x4] sm:$0xf]
      %v256 = vld [vmem:[#allocation8 + $0x8] sm:$0xf]
      %v257 = vld [vmem:[#allocation8 + $0xc] sm:$0xf]
      %v258 = vld [vmem:[#allocation8 + $0x10] sm:$0xf]
      %v259 = vld [vmem:[#allocation8 + $0x14] sm:$0xf]
      %v260 = vld [vmem:[#allocation8 + $0x18] sm:$0xf]
      %v261 = vld [vmem:[#allocation8 + $0x1c] sm:$0xf]
      %v262 = vld [vmem:[#allocation8 + $0x20] sm:$0xf]
      %v263 = vld [vmem:[#allocation8 + $0x24] sm:$0xf]
      %v264 = vld [vmem:[#allocation8 + $0x28] sm:$0xf]
      %v265 = vld [vmem:[#allocation8 + $0x2c] sm:$0xf]
      %v266 = vld [vmem:[#allocation8 + $0x30] sm:$0xf]
      %v267 = vld [vmem:[#allocation8 + $0x34] sm:$0xf]
      %v268 = vld [vmem:[#allocation8 + $0x38] sm:$0xf]
      %v269 = vld [vmem:[#allocation8 + $0x3c] sm:$0xf]
      %v270 = vlaneseq
      %v271 = vshrl.u32 %v270, 7
      %v272 = vsub.s32 1, %v271
      %v273 = vrot.slane %v241, %v272
      %v290 = vunpack.c.l.b16 %v254
      %v291 = vunpack.c.l.b16 %v255
      %v292 = vunpack.c.l.b16 %v256
      %v293 = vunpack.c.l.b16 %v257
      %v294 = vunpack.c.l.b16 %v258
      %v295 = vunpack.c.l.b16 %v259
      %v296 = vunpack.c.l.b16 %v260
      %v297 = vunpack.c.l.b16 %v261
      %v298 = vunpack.c.l.b16 %v262
      %v299 = vunpack.c.l.b16 %v263
      %v300 = vunpack.c.l.b16 %v264
      %v301 = vunpack.c.l.b16 %v265
      %v302 = vunpack.c.l.b16 %v266
      %v303 = vunpack.c.l.b16 %v267
      %v304 = vunpack.c.l.b16 %v268
      %v305 = vunpack.c.l.b16 %v269
      %v306 = vpack.c.b16 %v291, %v290
      %v307 = vpack.c.b16 %v293, %v292
      %v308 = vpack.c.b16 %v295, %v294
      %v309 = vpack.c.b16 %v297, %v296
      %v310 = vpack.c.b16 %v299, %v298
      %v311 = vpack.c.b16 %v301, %v300
      %v312 = vpack.c.b16 %v303, %v302
      %v313 = vpack.c.b16 %v305, %v304
      %322 = vmatprep.subr.bf16.mxu0 0
      %323 = vmatpush1.bf16.msra.mxu0 %v313
      %324 = vmatprep.subr.bf16.mxu0 0
      %325 = vmatpush1.bf16.msra.mxu0 %v312
      %326 = vmatprep.subr.bf16.mxu0 0
      %327 = vmatpush1.bf16.msra.mxu0 %v311
      %328 = vmatprep.subr.bf16.mxu0 0
      %329 = vmatpush1.bf16.msra.mxu0 %v310
      %330 = vmatprep.subr.bf16.mxu0 0
      %331 = vmatpush1.bf16.msra.mxu0 %v309
      %332 = vmatprep.subr.bf16.mxu0 0
      %333 = vmatpush1.bf16.msra.mxu0 %v308
      %334 = vmatprep.subr.bf16.mxu0 0
      %335 = vmatpush1.bf16.msra.mxu0 %v307
      %336 = vmatprep.subr.bf16.mxu0 0
      %337 = vmatpush1.bf16.msra.mxu0 %v306
      %338 = vmatprep.subr.bf16.mxu0 0
      %339 = vmatpush2.bf16.msra.mxu0 0
      %340 = vmatprep.subr.bf16.mxu0 0
      %341 = vmatpush2.bf16.msra.mxu0 0
      %342 = vmatprep.subr.bf16.mxu0 0
      %343 = vmatpush2.bf16.msra.mxu0 0
      %344 = vmatprep.subr.bf16.mxu0 0
      %345 = vmatpush2.bf16.msra.mxu0 0
      %346 = vmatprep.subr.bf16.mxu0 0
      %347 = vmatpush2.bf16.msra.mxu0 0
      %348 = vmatprep.subr.bf16.mxu0 0
      %349 = vmatpush2.bf16.msra.mxu0 0
      %350 = vmatprep.subr.bf16.mxu0 0
      %351 = vmatpush2.bf16.msra.mxu0 0
      %352 = vmatprep.subr.bf16.mxu0 0
      %353 = vmatpush2.bf16.msra.mxu0 0
      %354 = vmatprep.mubr.bf16.mxu0 0
      %355 = vmatmul.mubr.bf16.gmra.mxu0 %v253
      %v356 = vpop.f32.mrf.mxu0
      %v357 = vadd.f32 %v273, %v356
      %v358 = vpop.f32.mrf.mxu0
      %v359 = vpop.f32.mrf.mxu0
      %v360 = vpop.f32.mrf.mxu0
      %361 = vdwg.mxu0
      %v362 = vadd.f32 %v247, %v357
      %363 = vadd.xlane.f32.xlu0 %v362
      %v364 = vpop.xlane.xlu0 %363
      %v365 = vrcp.pop 128.0
      %v366 = vmul.f32 %v364, %v365
      %v367 = vsub.f32 %v362, %v366
      %v368 = vmul.f32 %v367, %v367
      %369 = vadd.xlane.f32.xlu0 %v368
      %v370 = vpop.xlane.xlu0 %369
      %v371 = vmul.f32 %v370, %v365
      %v372 = vadd.f32 %v371, 1e-05
      %v373 = vrsqrt.pop %v372
      %v374 = vmul.f32 %v367, %v373
      %v375 = vlaneseq
      %v376 = vshrl.u32 %v375, 7
      %v377 = vsub.s32 2, %v376
      %v378 = vrot.slane %v241, %v377
      %v379 = vmul.f32 %v374, %v378
      %v380 = vlaneseq
      %v381 = vshrl.u32 %v380, 7
      %v382 = vsub.s32 3, %v381
      %v383 = vrot.slane %v241, %v382
      %v384 = vadd.f32 %v379, %v383
      %385 = vst [vmem:[#allocation9] sm:$0xff] %v384
    $region37: #{tpu_custom_call.1} parent=1 // pred_fallthru
      _
    // Predicated region
    $region38: #{tpu_custom_call.1} parent=1 // pred_check
      _
    $region39: #{tpu_custom_call.1} parent=1 // pred_check_branch
      %387 = sbr.rel (0) target = $region41
    $region40: #{tpu_custom_call.1} parent=1 // pred_region
      %s389 = ssub.s32 128, 128
      %390 = vsyncadd [#allocation5], %s389
      %s392 = sshll.u32 [#allocation9], 4
      %s393 = int_to_ptr.vmem [resolvable:$true] %s392
      %395 = dma.vmem_to_hbm [thread:$0]  %s393, 128, %s4, [#allocation5]
    $region41: #{tpu_custom_call.1} parent=1 // pred_fallthru
      _
    // Predicated region
    $region42: #{tpu_custom_call.1} parent=1 // pred_check
      _
    $region43: #{tpu_custom_call.1} parent=1 // pred_check_branch
      %397 = sbr.rel (0) target = $region45
    $region44: #{tpu_custom_call.1} parent=1 // pred_region
      %398 = dma.done [#allocation5], 128
    $region45: #{tpu_custom_call.1} parent=1 // pred_fallthru
      _
    %399 = vsyncpa [#allocation4], 1
    %400 = vsyncpa [#allocation7], 1
    %401 = vsyncpa [#allocation5], 1

</llo_original>
